<compile_context>
chip_gen: v5e
topology: v5e:2x2
jax: 0.10.0
libtpu: 0.0.40
codegen_flags: <defaults>
</compile_context>

<pallas_src>
import functools

import jax
import jax.numpy as jnp
from jax import lax
from jax.experimental import pallas as pl
from jax.experimental.pallas import tpu as pltpu

_SUBLANE = 8
_LANE = 128


def _round_up(x, m):
    return ((x + m - 1) // m) * m


def _cdiv(a, b):
    return -(-a // b)


def _choose_tiling(n, c):
    """Pick (tile_n, chunk, num_tiles, n_pad, vmem_limit_bytes)."""
    # Per-row VMEM footprint of the pipelined input blocks.  Any block whose
    # last dim is < 128 is padded to a full 128-lane tile in VMEM, so both the
    # pred block (for C <= 128) and the (tile_n, 1) int32 target column cost
    # 512 B/row in VMEM regardless of C.
    pred_row = 4 * _round_up(max(c, 1), _LANE)
    tgt_row = 4 * _LANE
    per_row = pred_row + tgt_row

    # (1) HBM amortization: aim for >= ~1 MiB of useful pred bytes per step.
    tile_hbm = _round_up(max((1 << 20) // (4 * max(c, 1)), 512), _SUBLANE)
    # (2) VMEM budget for the double-buffered input pipeline.
    input_budget = 32 << 20
    tile_vmem = max(_SUBLANE, (input_budget // (2 * per_row)) // _SUBLANE * _SUBLANE)
    tile_n = max(_SUBLANE, min(tile_hbm, tile_vmem, 16384, _round_up(n, _SUBLANE)))

    # (3) Megacore balance: >= 2 grid steps (even count when possible).
    num_tiles = _cdiv(n, tile_n)
    if num_tiles == 1 and n > 512:
        num_tiles = 2
    elif num_tiles > 1 and num_tiles % 2 == 1:
        num_tiles += 1
    tile_n = min(tile_n, _round_up(_cdiv(n, num_tiles), _SUBLANE))

    # (4) In-kernel strip-mining chunk: cap each [chunk, C] f32 temporary at
    #     ~1 MiB so large tiles don't inflate vreg/VMEM pressure.
    chunk = max(_SUBLANE,
                min(256, tile_n,
                    max(_SUBLANE, ((1 << 20) // pred_row) // _SUBLANE * _SUBLANE)))
    tile_n = _round_up(tile_n, chunk)

    num_tiles = _cdiv(n, tile_n)
    n_pad = num_tiles * tile_n

    # Explicit VMEM limit from the real buffer math (kept <= ~48 MiB so the
    # same tiling also fits v7x's 64 MiB physical VMEM).
    need = (2 * tile_n * per_row                      # double-buffered pred + target
            + 8 * chunk * pred_row                    # in-kernel f32 temporaries
            + 2 * _SUBLANE * _LANE * 4                # (1, 8, 128) output blocks
            + 2 * _SUBLANE * _round_up(c, _LANE) * 4  # alpha block
            + (4 << 20))                              # headroom
    vmem_limit = int(min(max(need, 16 << 20), 48 << 20))
    return tile_n, chunk, num_tiles, n_pad, vmem_limit


def _focal_loss_kernel(pred_ref, target_ref, alpha_ref, out_ref, *,
                       gamma, n_total, tile_n, chunk):
    c = pred_ref.shape[1]
    num_chunks = tile_n // chunk
    tile_start = pl.program_id(0) * tile_n
    alpha_row = alpha_ref[...].astype(jnp.float32)            # (1, C)
    g = float(gamma)

    def body(j, acc):
        start = pl.multiple_of(j * chunk, chunk)
        x = pred_ref[pl.ds(start, chunk), :].astype(jnp.float32)   # (chunk, C)
        tgt = target_ref[pl.ds(start, chunk), :]                   # (chunk, 1) int32

        # Numerically stable logsumexp over the class axis.
        m = jnp.max(x, axis=1, keepdims=True)                              # (chunk, 1)
        lse = m + jnp.log(jnp.sum(jnp.exp(x - m), axis=1, keepdims=True))  # (chunk, 1)

        # One-hot gather of the target column (no full log_softmax tile).
        cls = lax.broadcasted_iota(jnp.int32, (chunk, c), 1)
        onehot = (cls == tgt).astype(jnp.float32)                          # (chunk, C)
        x_at_t = jnp.sum(x * onehot, axis=1, keepdims=True)                # (chunk, 1)
        alpha_t = jnp.sum(alpha_row * onehot, axis=1, keepdims=True)       # (chunk, 1)

        logpt = x_at_t - lse
        ce = -logpt
        pt = jnp.exp(logpt)
        # pt may exceed 1.0 by a ulp; clamp so non-integer gamma never sees a
        # negative pow base (would produce NaN).
        omp = jnp.maximum(1.0 - pt, 0.0)

        if g == 0.0:
            w = jnp.ones_like(omp)
        elif g.is_integer() and 1 <= int(g) <= 4:
            # Small integer gamma (incl. default 2): repeated multiply, no EUP pow.
            w = omp
            for _ in range(int(g) - 1):
                w = w * omp
        else:
            w = omp ** g

        focal = alpha_t * w * ce                                           # (chunk, 1)

        # Mask rows that belong to the zero padding of the ragged last tile.
        row = tile_start + start + lax.broadcasted_iota(jnp.int32, (chunk, 1), 0)
        focal = jnp.where(row < n_total, focal, 0.0)
        return acc + focal

    acc0 = jnp.zeros((chunk, 1), jnp.float32)
    if num_chunks == 1:
        acc = body(0, acc0)
    else:
        acc = lax.fori_loop(0, num_chunks, body, acc0, unroll=num_chunks <= 8)

    # Per-tile partial sum, written lane-dense so the batch axis stays "parallel".
    partial = jnp.sum(acc, axis=0, keepdims=True)                          # (1, 1)
    out_ref[...] = jnp.broadcast_to(partial.reshape(1, 1, 1), (1, 8, 128))


def focal_loss(pred, target, alpha=None, gamma=2.0, reduction="mean"):
    """Pallas TPU equivalent of FocalLoss.forward ('mean' / 'sum')."""
    n, c = pred.shape
    if alpha is None:
        alpha_arr = jnp.ones((1, c), dtype=jnp.float32)
    else:
        alpha_arr = jnp.asarray(alpha, dtype=jnp.float32).reshape(1, c)
    target_col = jnp.asarray(target, dtype=jnp.int32).reshape(n, 1)

    tile_n, chunk, num_tiles, n_pad, vmem_limit = _choose_tiling(n, c)

    if n_pad != n:
        pred = jnp.pad(pred, ((0, n_pad - n), (0, 0)))
        target_col = jnp.pad(target_col, ((0, n_pad - n), (0, 0)))

    partials = pl.pallas_call(
        functools.partial(_focal_loss_kernel, gamma=float(gamma), n_total=n,
                          tile_n=tile_n, chunk=chunk),
        grid=(num_tiles,),
        out_shape=jax.ShapeDtypeStruct((num_tiles, 8, 128), jnp.float32),
        in_specs=[
            pl.BlockSpec((tile_n, c), lambda i: (i, 0)),
            pl.BlockSpec((tile_n, 1), lambda i: (i, 0)),
            pl.BlockSpec((1, c), lambda i: (0, 0)),
        ],
        out_specs=pl.BlockSpec((1, 8, 128), lambda i: (i, 0, 0)),
        compiler_params=pltpu.CompilerParams(
            dimension_semantics=("parallel",),
            vmem_limit_bytes=vmem_limit),
    )(pred, target_col, alpha_arr)

    total = jnp.sum(partials[:, 0, 0])
    if reduction == "mean":
        return total / jnp.float32(n)
    if reduction == "sum":
        return total
    # TODO(synk): reduction='none' needs a per-row [N] output block; only the
    # 'mean'/'sum' reductions of the reference module are implemented here.
    raise NotImplementedError("reduction must be 'mean' or 'sum'")


def _ref_focal_loss(pred, target, alpha, gamma, reduction="mean"):
    # Pure-JAX reference for the sanity check.
    log_sm = jax.nn.log_softmax(pred.astype(jnp.float32), axis=1)
    logpt = jnp.take_along_axis(log_sm, target[:, None], axis=1)[:, 0]
    ce = -logpt
    pt = jnp.exp(logpt)
    a = alpha[target]
    f = a * (1.0 - pt) ** gamma * ce
    return jnp.mean(f) if reduction == "mean" else jnp.sum(f)


if __name__ == "__main__":
    key = jax.random.PRNGKey(0)
    k1, k2, k3, k4, k5, k6, k7 = jax.random.split(key, 7)

    # Test 1: small shape consistent with the module (batch=8, n_classes=16), default alpha.
    N, C = 8, 16
    pred = jax.random.normal(k1, (N, C), dtype=jnp.float32)
    target = jax.random.randint(k2, (N,), 0, C, dtype=jnp.int32)

    loss = focal_loss(pred, target, alpha=None, gamma=2.0, reduction="mean")
    loss = jax.block_until_ready(loss)
    ref = _ref_focal_loss(pred, target, jnp.ones((C,), jnp.float32), 2.0)
    assert jnp.allclose(loss, ref, rtol=1e-5, atol=1e-6), (loss, ref)

    # Test 2: multi-tile grid + ragged last tile + non-uniform alpha.
    N2, C2 = 1100, 10
    pred2 = jax.random.normal(k3, (N2, C2), dtype=jnp.float32)
    target2 = jax.random.randint(k4, (N2,), 0, C2, dtype=jnp.int32)
    alpha2 = jax.random.uniform(k5, (C2,), dtype=jnp.float32) + 0.1

    loss2 = focal_loss(pred2, target2, alpha=alpha2, gamma=2.0, reduction="mean")
    loss2 = jax.block_until_ready(loss2)
    ref2 = _ref_focal_loss(pred2, target2, alpha2, 2.0)
    assert jnp.allclose(loss2, ref2, rtol=1e-4, atol=1e-5), (loss2, ref2)

    # Test 3: bf16 input + non-integer gamma (exercises the (1-pt) clamp) + 'sum'.
    N3, C3 = 640, 16
    pred3 = jax.random.normal(k6, (N3, C3), dtype=jnp.float32).astype(jnp.bfloat16)
    target3 = jax.random.randint(k7, (N3,), 0, C3, dtype=jnp.int32)

    loss3 = focal_loss(pred3, target3, alpha=None, gamma=1.5, reduction="sum")
    loss3 = jax.block_until_ready(loss3)
    ref3 = _ref_focal_loss(pred3, target3, jnp.ones((C3,), jnp.float32), 1.5, "sum")
    assert jnp.allclose(loss3, ref3, rtol=2e-3, atol=1e-3), (loss3, ref3)

    print("KERNEL_OK")
</pallas_src>

<mosaic_0001>
module attributes {stable_mosaic.version = 11 : i64} {
  func.func @_focal_loss_kernel(%arg0: i32, %arg1: memref<8x16xf32, #tpu.memory_space<vmem>>, %arg2: memref<8x1xi32, #tpu.memory_space<vmem>>, %arg3: memref<1x16xf32, #tpu.memory_space<vmem>>, %arg4: memref<1x8x128xf32, #tpu.memory_space<vmem>>) attributes {dimension_semantics = [#tpu.dimension_semantics<parallel>], iteration_bounds = array<i64: 1>, scalar_prefetch = 0 : i64, scratch_operands = 0 : i64, tpu.core_type = #tpu.core_type<tc>, window_params = [{transform_indices = @transform_0, window_bounds = array<i64: 8, 16>}, {transform_indices = @transform_1, window_bounds = array<i64: 8, 1>}, {pipeline_mode = #tpu.pipeline_mode<synchronous>, transform_indices = @transform_2, window_bounds = array<i64: 1, 16>}, {transform_indices = @transform_3, window_bounds = array<i64: 1, 8, 128>}]} {
    %c8_i32 = arith.constant 8 : i32
    %0 = arith.muli %arg0, %c8_i32 : i32
    %c0 = arith.constant 0 : index
    %c0_0 = arith.constant 0 : index
    %1 = vector.load %arg3[%c0, %c0_0] : memref<1x16xf32, #tpu.memory_space<vmem>>, vector<1x16xf32>
    %cst = arith.constant 0.000000e+00 : f32
    %2 = vector.broadcast %cst : f32 to vector<8x1xf32>
    %c0_i32 = arith.constant 0 : i32
    %3 = tpu.assume_multiple %c0_i32, 8 : i32
    %4 = arith.index_cast %3 : i32 to index
    %c0_1 = arith.constant 0 : index
    %5 = vector.load %arg1[%4, %c0_1] : memref<8x16xf32, #tpu.memory_space<vmem>>, vector<8x16xf32>
    %6 = arith.index_cast %3 : i32 to index
    %c0_2 = arith.constant 0 : index
    %7 = vector.load %arg2[%6, %c0_2] : memref<8x1xi32, #tpu.memory_space<vmem>>, vector<8x1xi32>
    %cst_3 = arith.constant dense<0xFF800000> : vector<8xf32>
    %8 = vector.multi_reduction <maximumf>, %5, %cst_3 [1] : vector<8x16xf32> to vector<8xf32>
    %9 = vector.shape_cast %8 : vector<8xf32> to vector<8x1xf32>
    %10 = vector.broadcast %9 : vector<8x1xf32> to vector<8x16xf32>
    %11 = arith.subf %5, %10 : vector<8x16xf32>
    %12 = math.exp %11 : vector<8x16xf32>
    %cst_4 = arith.constant dense<0.000000e+00> : vector<8xf32>
    %13 = vector.multi_reduction <add>, %12, %cst_4 [1] : vector<8x16xf32> to vector<8xf32>
    %14 = vector.shape_cast %13 : vector<8xf32> to vector<8x1xf32>
    %15 = math.log %14 : vector<8x1xf32>
    %16 = arith.addf %9, %15 : vector<8x1xf32>
    %17 = tpu.iota {dimensions = array<i32: 1>} : vector<8x16xi32>
    %18 = vector.broadcast %7 : vector<8x1xi32> to vector<8x16xi32>
    %19 = arith.cmpi eq, %17, %18 : vector<8x16xi32>
    %20 = arith.extui %19 : vector<8x16xi1> to vector<8x16xi32>
    %21 = arith.sitofp %20 : vector<8x16xi32> to vector<8x16xf32>
    %22 = arith.mulf %5, %21 : vector<8x16xf32>
    %cst_5 = arith.constant dense<0.000000e+00> : vector<8xf32>
    %23 = vector.multi_reduction <add>, %22, %cst_5 [1] : vector<8x16xf32> to vector<8xf32>
    %24 = vector.shape_cast %23 : vector<8xf32> to vector<8x1xf32>
    %25 = vector.broadcast %1 : vector<1x16xf32> to vector<8x16xf32>
    %26 = arith.mulf %25, %21 : vector<8x16xf32>
    %cst_6 = arith.constant dense<0.000000e+00> : vector<8xf32>
    %27 = vector.multi_reduction <add>, %26, %cst_6 [1] : vector<8x16xf32> to vector<8xf32>
    %28 = vector.shape_cast %27 : vector<8xf32> to vector<8x1xf32>
    %29 = arith.subf %24, %16 : vector<8x1xf32>
    %cst_7 = arith.constant 0.000000e+00 : f32
    %30 = vector.broadcast %cst_7 : f32 to vector<8x1xf32>
    %31 = arith.subf %30, %29 : vector<8x1xf32>
    %32 = math.exp %29 : vector<8x1xf32>
    %cst_8 = arith.constant 1.000000e+00 : f32
    %33 = vector.broadcast %cst_8 : f32 to vector<8x1xf32>
    %34 = arith.subf %33, %32 : vector<8x1xf32>
    %cst_9 = arith.constant 0.000000e+00 : f32
    %35 = vector.broadcast %cst_9 : f32 to vector<8x1xf32>
    %36 = arith.maximumf %34, %35 : vector<8x1xf32>
    %37 = arith.mulf %36, %36 : vector<8x1xf32>
    %38 = arith.mulf %28, %37 : vector<8x1xf32>
    %39 = arith.mulf %38, %31 : vector<8x1xf32>
    %40 = arith.addi %0, %3 : i32
    %41 = tpu.iota {dimensions = array<i32: 0>} : vector<8x1xi32>
    %42 = vector.broadcast %40 : i32 to vector<8x1xi32>
    %43 = arith.addi %42, %41 : vector<8x1xi32>
    %c8_i32_10 = arith.constant 8 : i32
    %44 = vector.broadcast %c8_i32_10 : i32 to vector<8x1xi32>
    %45 = arith.cmpi slt, %43, %44 : vector<8x1xi32>
    %cst_11 = arith.constant 0.000000e+00 : f32
    %46 = vector.broadcast %cst_11 : f32 to vector<8x1xf32>
    %47 = arith.select %45, %39, %46 : vector<8x1xi1>, vector<8x1xf32>
    %48 = arith.addf %2, %47 : vector<8x1xf32>
    %cst_12 = arith.constant dense<0.000000e+00> : vector<1xf32>
    %49 = vector.multi_reduction <add>, %48, %cst_12 [0] : vector<8x1xf32> to vector<1xf32>
    %50 = vector.shape_cast %49 : vector<1xf32> to vector<1x1xf32>
    %51 = vector.shape_cast %50 : vector<1x1xf32> to vector<1x1x1xf32>
    %52 = vector.shape_cast %51 : vector<1x1x1xf32> to vector<1x1x1xf32>
    %53 = vector.broadcast %52 : vector<1x1x1xf32> to vector<1x8x128xf32>
    %c0_13 = arith.constant 0 : index
    %c0_14 = arith.constant 0 : index
    %c0_15 = arith.constant 0 : index
    %54 = vector.load %arg4[%c0_13, %c0_14, %c0_15] : memref<1x8x128xf32, #tpu.memory_space<vmem>>, vector<1x8x128xf32>
    tpu.vector_store %arg4[%c0_13, %c0_14, %c0_15], %53 {strides = array<i32>} : memref<1x8x128xf32, #tpu.memory_space<vmem>>, vector<1x8x128xf32>,
    return
  }
  func.func @transform_0(%arg0: i32) -> (i32, i32) {
    %c0_i32 = arith.constant 0 : i32
    %c0_i32_0 = arith.constant 0 : i32
    return %arg0, %c0_i32 : i32, i32
  }
  func.func @transform_1(%arg0: i32) -> (i32, i32) {
    %c0_i32 = arith.constant 0 : i32
    %c0_i32_0 = arith.constant 0 : i32
    return %arg0, %c0_i32 : i32, i32
  }
  func.func @transform_2(%arg0: i32) -> (i32, i32) {
    %c0_i32 = arith.constant 0 : i32
    %c0_i32_0 = arith.constant 0 : i32
    %c0_i32_1 = arith.constant 0 : i32
    return %c0_i32, %c0_i32_0 : i32, i32
  }
  func.func @transform_3(%arg0: i32) -> (i32, i32, i32) {
    %c0_i32 = arith.constant 0 : i32
    %c0_i32_0 = arith.constant 0 : i32
    %c0_i32_1 = arith.constant 0 : i32
    return %arg0, %c0_i32, %c0_i32_0 : i32, i32, i32
  }
}

</mosaic_0001>

<llo_original>
// kernel: tpu_custom_call.1
$region0: #{tpu_custom_call.1}
  #allocation0 [shape = 'u32[]', space=smem, size = 0x4, offset = 0x4, fixed_abs, tag = 'smem constant byte address 0x4 - core index']
  #allocation1 [shape = 'u32[72,128]{1,0:T(1,128)}', space=vmem, size = 0x9000, scoped, tag = 'internal scratch']
  %s0 = inlined_call_operand.vmem [shape: f32[8,16], index: 0, kind: input, shape index: {}]
  %s1 = inlined_call_operand.vmem [shape: s32[8,1], index: 1, kind: input, shape index: {}]
  %s2 = inlined_call_operand.vmem [shape: f32[1,16], index: 2, kind: input, shape index: {}]
  %s3 = inlined_call_operand.hbm [shape: f32[1,8,128], index: 3, kind: output, shape index: {}]
  %s4 = sld [smem:[#allocation0]]
  $region22: #{tpu_custom_call.1} parent=0
    _
  %s6 = ssub.s32 1, %s4
  %s7 = scalar_select 0, %s6, %s4
  $region1: #{tpu_custom_call.1} parent=0
    #allocation2 [shape = 'u8[4096]{0}', space=vmem, size = 0x1000, scoped, tag = 'output window, operand 0, single buffered']
    #allocation3 [shape = 's32[1]{0}', space=sflag, size = 0x4, scoped, tag = 'scoped memory for tpu_custom_call.1']
    %8 = vsyncpa [#allocation3], 0
    // Predicated region
    $region2: #{tpu_custom_call.1} parent=1 // pred_check
      _
    $region3: #{tpu_custom_call.1} parent=1 // pred_check_branch
      %10 = sbr.rel (0) target = $region5
    $region4: #{tpu_custom_call.1} parent=1 // pred_region
      _
    $region5: #{tpu_custom_call.1} parent=1 // pred_fallthru
      _
    // Predicated region
    $region6: #{tpu_custom_call.1} parent=1 // pred_check
      _
    $region7: #{tpu_custom_call.1} parent=1 // pred_check_branch
      %12 = sbr.rel (0) target = $region9
    $region8: #{tpu_custom_call.1} parent=1 // pred_region
      _
    $region9: #{tpu_custom_call.1} parent=1 // pred_fallthru
      _
    // Predicated region
    $region10: #{tpu_custom_call.1} parent=1 // pred_check
      _
    $region11: #{tpu_custom_call.1} parent=1 // pred_check_branch
      %14 = sbr.rel (0) target = $region13
    $region12: #{tpu_custom_call.1} parent=1 // pred_region
      _
    $region13: #{tpu_custom_call.1} parent=1 // pred_fallthru
      _
    %s15 = smul.u32 0, 8
    %v16 = vld [vmem:[%s2] sm:$0x1]
    %v17 = vld [vmem:[%s0] sm:$0xff]
    %v18 = vld [vmem:[%s1] sm:$0xff]
    %vm19 = vcmask 130048
    %v20 = vsel %vm19, %v17, -inf
    %21 = vmax.xlane.f32.xlu0 %v20
    %v22 = vpop.xlane.xlu0 %21
    %v23 = vsub.f32 %v17, %v22
    %v24 = vmul.f32 %v23, 1.442695
    %v25 = vpow.pop %v24
    %v26 = vsel %vm19, %v25, 0.0
    %27 = vadd.xlane.f32.xlu0 %v26
    %v28 = vpop.xlane.xlu0 %27
    %v29 = vlog2.pop %v28
    %v30 = vmul.f32 %v29, 0.6931472
    %v31 = vadd.f32 %v22, %v30
    %v32 = vlaneseq
    %v33 = vand.u32 %v32, 127
    %34 = vset.pattern.permute.xlu0 0
    %35 = vperm.xlu0 %34, %v18
    %v36 = vpop.permute.xlu0 %35
    %vm37 = vcmp.eq.s32.totalorder %v33, %v36
    %v38 = vsel %vm37, 1, 0
    %v39 = vcvt.s32.f32 %v38
    %v40 = vmul.f32 %v17, %v39
    %v41 = vsel %vm19, %v40, 0.0
    %42 = vadd.xlane.f32.xlu0 %v41
    %v43 = vpop.xlane.xlu0 %42
    %v45 = vperm.slane %v16, 0
    %v47 = vmul.f32 %v45, %v39
    %v48 = vsel %vm19, %v47, 0.0
    %49 = vadd.xlane.f32.xlu0 %v48
    %v50 = vpop.xlane.xlu0 %49
    %v51 = vsub.f32 %v43, %v31
    %v52 = vsub.f32 0.0, %v51
    %v53 = vmul.f32 %v51, 1.442695
    %v54 = vpow.pop %v53
    %v55 = vsub.f32 1.0, %v54
    %v56 = vmax.f32 %v55, 0.0
    %v57 = vmul.f32 %v56, %v56
    %v58 = vmul.f32 %v50, %v57
    %v59 = vmul.f32 %v58, %v52
    %s60 = sadd.s32 %s15, 0
    %v61 = vlaneseq
    %v62 = vshrl.u32 %v61, 7
    %v63 = vstv %s60
    %v64 = vadd.s32 %v63, %v62
    %vm65 = vcmp.lt.s32.totalorder %v64, 8
    %v66 = vsel %vm65, %v59, 0.0
    %v67 = vadd.f32 %v66, 0.0
    %v68 = vrot.slane %v67, 4
    %v69 = vadd.f32 %v67, %v68
    %v70 = vrot.slane %v69, 2
    %v71 = vadd.f32 %v69, %v70
    %v72 = vrot.slane %v71, 1
    %v73 = vadd.f32 %v71, %v72
    %74 = vst [vmem:[#allocation2] sm:$0xff] %v73
    // Predicated region
    $region14: #{tpu_custom_call.1} parent=1 // pred_check
      _
    $region15: #{tpu_custom_call.1} parent=1 // pred_check_branch
      %76 = sbr.rel (0) target = $region17
    $region16: #{tpu_custom_call.1} parent=1 // pred_region
      %78 = vsyncadd [#allocation3], 0
      %s80 = sshll.u32 [#allocation2], 4
      %s81 = int_to_ptr.vmem [resolvable:$true] %s80
      %s82 = sshll.u32 %s3, 4
      %s83 = int_to_ptr.hbm [resolvable:$true] %s82
      %85 = dma.vmem_to_hbm [thread:$0]  %s81, 128, %s83, [#allocation3]
    $region17: #{tpu_custom_call.1} parent=1 // pred_fallthru
      _
    // Predicated region
    $region18: #{tpu_custom_call.1} parent=1 // pred_check
      _
    $region19: #{tpu_custom_call.1} parent=1 // pred_check_branch
      %87 = sbr.rel (0) target = $region21
    $region20: #{tpu_custom_call.1} parent=1 // pred_region
      %89 = dma.done [#allocation3], 128
    $region21: #{tpu_custom_call.1} parent=1 // pred_fallthru
      _
    %90 = vsyncpa [#allocation3], 1

</llo_original>
